<compile_context>
chip_gen: v7x
topology: tpu7x:2x2x1
jax: 0.10.0
libtpu: 0.0.40
codegen_flags: <defaults>
</compile_context>

<pallas_src>
import functools

import jax
import jax.numpy as jnp
from jax.experimental import pallas as pl
from jax.experimental.pallas import tpu as pltpu


# Per-buffer output-tile VMEM budget.  With double buffering plus the resident
# weight this stays well inside v7x's 64 MiB VMEM and the 32 MiB scoped limit.
_VMEM_OUT_TILE_BYTES = 4 * 1024 * 1024


def _make_kernel(k_dim, use_vpu):
    def kernel(z_ref, w_ref, b_ref, o_ref):
        z = z_ref[...].astype(jnp.float32)   # (TN, K)
        w = w_ref[...].astype(jnp.float32)   # (K, OW)
        b = b_ref[...].astype(jnp.float32)   # (1, OW)
        if use_vpu:
            # Tiny contraction: K broadcast-FMAs on the VPU beat a degenerate
            # MXU matmul that would use a sliver of the systolic array.
            y = z[:, 0:1] * w[0:1, :] + b
            for k in range(1, k_dim):
                y = y + z[:, k:k + 1] * w[k:k + 1, :]
        else:
            y = jnp.dot(z, w, preferred_element_type=jnp.float32) + b
        y = jnp.tanh(jnp.maximum(y, 0.0))     # relu then tanh, f32 epilogue
        o_ref[...] = y.astype(o_ref.dtype)
    return kernel


def prepare_params(weight, bias):
    """One-time parameter prep (call OUTSIDE the per-step hot path).

    weight: (C*C, C) in PyTorch Linear layout; bias: (C*C,).
    Returns (w_k, b_k, group):
      group == 1 : w_k = weight.T of shape (C, C*C), b_k = (1, C*C).
      group  > 1 : w_k is a block-diagonal (group*C, 128) weight so the kernel
                   emits `group` samples per 128-lane output row (lane-dense
                   stores for small C); b_k = (1, 128) tiled bias.
    """
    cc, c = weight.shape
    assert cc == c * c and bias.shape == (cc,)
    w_t = jnp.asarray(weight).T                              # (C, C*C)
    if cc < 128 and 128 % cc == 0:
        g = 128 // cc
        blk = jnp.zeros((g, c, g, cc), w_t.dtype)
        idx = jnp.arange(g)
        blk = blk.at[idx, :, idx, :].set(w_t)                # diagonal blocks
        w_k = blk.reshape(g * c, g * cc)                     # (G*C, 128)
        b_k = jnp.tile(jnp.asarray(bias).reshape(1, cc), (1, g))  # (1, 128)
        return w_k, b_k, g
    return w_t, jnp.asarray(bias).reshape(1, cc), 1


def final_tanh_f(z, w_k, b_k, *, input_channels, group):
    """z: (..., C); w_k/b_k/group from prepare_params.  Returns (..., C, C)."""
    c = input_channels
    cc = c * c
    *lead, c_in = z.shape
    assert c_in == c

    z2 = z.reshape(-1, c)
    n = z2.shape[0]

    if group > 1:
        # Pad N to a multiple of `group`, then fold `group` samples per row so
        # the output last dim is exactly 128 lanes.
        n_pad = pl.cdiv(n, group) * group
        if n_pad != n:
            z2 = jnp.pad(z2, ((0, n_pad - n), (0, 0)))
        n_rows = n_pad // group
        zk = z2.reshape(n_rows, group * c)
    else:
        n_pad = n
        n_rows = n
        zk = z2

    k_dim = zk.shape[1]          # contraction depth seen by the kernel
    out_w = w_k.shape[1]         # output lane width (128 on the grouped path)

    # Row-tile size from the VMEM budget (the output tile dominates).
    tn = max(1, _VMEM_OUT_TILE_BYTES // (out_w * 4))
    tn = min(tn, n_rows, 16384)
    if tn < n_rows:
        tn = max(8, (tn // 8) * 8)          # sublane-aligned tiles
    grid = (pl.cdiv(n_rows, tn),)

    kernel = _make_kernel(k_dim, use_vpu=(k_dim <= 8))

    cost = pl.CostEstimate(
        flops=2 * n_rows * k_dim * out_w,
        transcendentals=n_rows * out_w,
        bytes_accessed=4 * (n_rows * k_dim + k_dim * out_w + out_w
                            + n_rows * out_w),
    )

    out = pl.pallas_call(
        kernel,
        out_shape=jax.ShapeDtypeStruct((n_rows, out_w), z.dtype),
        grid=grid,
        in_specs=[
            pl.BlockSpec((tn, k_dim), lambda i: (i, 0)),
            # Constant index_maps: weight/bias stay VMEM-resident, no re-fetch.
            pl.BlockSpec((k_dim, out_w), lambda i: (0, 0)),
            pl.BlockSpec((1, out_w), lambda i: (0, 0)),
        ],
        out_specs=pl.BlockSpec((tn, out_w), lambda i: (i, 0)),
        compiler_params=pltpu.CompilerParams(
            dimension_semantics=("parallel",),
            vmem_limit_bytes=32 * 1024 * 1024,
        ),
        cost_estimate=cost,
    )(zk, w_k, b_k)

    out = out.reshape(n_pad, cc)[:n]        # free row-major metadata reshape
    return out.reshape(*lead, c, c)


def _reference(z, weight, bias):
    y = jnp.einsum("...i,oi->...o", z, weight) + bias
    c = weight.shape[1]
    y = y.reshape(*z.shape[:-1], c, c)
    return jnp.tanh(jnp.maximum(y, 0.0))


if __name__ == "__main__":
    # Module hyperparameters (only input_channels matters for the forward).
    input_channels = 4
    hidden_channels = 32            # unused in forward
    hidden_hidden_channels = 32     # unused in forward
    num_hidden_layers = 1           # unused in forward

    batch, seq = 2, 8

    key = jax.random.PRNGKey(0)
    kz, kw, kb = jax.random.split(key, 3)

    # Deterministic parameter init (PyTorch Linear-style uniform +-1/sqrt(in)).
    bound = 1.0 / (input_channels ** 0.5)
    weight = jax.random.uniform(
        kw, (input_channels * input_channels, input_channels),
        minval=-bound, maxval=bound, dtype=jnp.float32)
    bias = jax.random.uniform(
        kb, (input_channels * input_channels,),
        minval=-bound, maxval=bound, dtype=jnp.float32)

    z = jax.random.normal(kz, (batch, seq, input_channels), dtype=jnp.float32)

    # One-time parameter prep, outside the hot path (no per-call weight.T).
    w_k, b_k, group = prepare_params(weight, bias)
    w_k, b_k = jax.block_until_ready((w_k, b_k))

    fwd = jax.jit(functools.partial(
        final_tanh_f, input_channels=input_channels, group=group))

    out = jax.block_until_ready(fwd(z, w_k, b_k))

    ref = _reference(z, weight, bias)
    assert out.shape == (batch, seq, input_channels, input_channels)
    assert jnp.allclose(out, ref, atol=1e-5, rtol=1e-5)

    print("KERNEL_OK")
</pallas_src>

<mosaic_0001>
module attributes {stable_mosaic.version = 11 : i64} {
  func.func @kernel(%arg0: i32, %arg1: memref<2x32xf32, #tpu.memory_space<vmem>>, %arg2: memref<32x128xf32, #tpu.memory_space<vmem>>, %arg3: memref<1x128xf32, #tpu.memory_space<vmem>>, %arg4: memref<2x128xf32, #tpu.memory_space<vmem>>) attributes {dimension_semantics = [#tpu.dimension_semantics<parallel>], iteration_bounds = array<i64: 1>, scalar_prefetch = 0 : i64, scratch_operands = 0 : i64, tpu.core_type = #tpu.core_type<tc>, window_params = [{transform_indices = @transform_0, window_bounds = array<i64: 2, 32>}, {pipeline_mode = #tpu.pipeline_mode<synchronous>, transform_indices = @transform_1, window_bounds = array<i64: 32, 128>}, {pipeline_mode = #tpu.pipeline_mode<synchronous>, transform_indices = @transform_2, window_bounds = array<i64: 1, 128>}, {transform_indices = @transform_3, window_bounds = array<i64: 2, 128>}]} {
    %c0 = arith.constant 0 : index
    %c0_0 = arith.constant 0 : index
    %0 = vector.load %arg1[%c0, %c0_0] : memref<2x32xf32, #tpu.memory_space<vmem>>, vector<2x32xf32>
    %c0_1 = arith.constant 0 : index
    %c0_2 = arith.constant 0 : index
    %1 = vector.load %arg2[%c0_1, %c0_2] : memref<32x128xf32, #tpu.memory_space<vmem>>, vector<32x128xf32>
    %c0_3 = arith.constant 0 : index
    %c0_4 = arith.constant 0 : index
    %2 = vector.load %arg3[%c0_3, %c0_4] : memref<1x128xf32, #tpu.memory_space<vmem>>, vector<1x128xf32>
    %cst = arith.constant dense<0.000000e+00> : vector<2x128xf32>
    %3 = tpu.matmul %0, %1, %cst {dimension_numbers = #tpu.dot_dimension_numbers<[1], [0], [0], [1], [0, 0, 1, 1], [], []>} : vector<2x32xf32>, vector<32x128xf32>, vector<2x128xf32> -> vector<2x128xf32>
    %4 = vector.broadcast %2 : vector<1x128xf32> to vector<2x128xf32>
    %5 = arith.addf %3, %4 : vector<2x128xf32>
    %cst_5 = arith.constant 0.000000e+00 : f32
    %6 = vector.broadcast %cst_5 : f32 to vector<2x128xf32>
    %7 = arith.maximumf %5, %6 : vector<2x128xf32>
    %8 = math.tanh %7 : vector<2x128xf32>
    %c0_6 = arith.constant 0 : index
    %c0_7 = arith.constant 0 : index
    %9 = vector.load %arg4[%c0_6, %c0_7] : memref<2x128xf32, #tpu.memory_space<vmem>>, vector<2x128xf32>
    tpu.vector_store %arg4[%c0_6, %c0_7], %8 {strides = array<i32>} : memref<2x128xf32, #tpu.memory_space<vmem>>, vector<2x128xf32>,
    return
  }
  func.func @transform_0(%arg0: i32) -> (i32, i32) {
    %c0_i32 = arith.constant 0 : i32
    %c0_i32_0 = arith.constant 0 : i32
    return %arg0, %c0_i32 : i32, i32
  }
  func.func @transform_1(%arg0: i32) -> (i32, i32) {
    %c0_i32 = arith.constant 0 : i32
    %c0_i32_0 = arith.constant 0 : i32
    %c0_i32_1 = arith.constant 0 : i32
    return %c0_i32, %c0_i32_0 : i32, i32
  }
  func.func @transform_2(%arg0: i32) -> (i32, i32) {
    %c0_i32 = arith.constant 0 : i32
    %c0_i32_0 = arith.constant 0 : i32
    %c0_i32_1 = arith.constant 0 : i32
    return %c0_i32, %c0_i32_0 : i32, i32
  }
  func.func @transform_3(%arg0: i32) -> (i32, i32) {
    %c0_i32 = arith.constant 0 : i32
    %c0_i32_0 = arith.constant 0 : i32
    return %arg0, %c0_i32 : i32, i32
  }
}

</mosaic_0001>

<llo_original>
// kernel: final_tanh_f.1
$region0: #{final_tanh_f.1}
  #allocation0 [shape = 'u32[]', space=smem, size = 0x4, offset = 0x4, fixed_abs, tag = 'smem constant byte address 0x4 - core index']
  #allocation1 [shape = 'u32[144,128]{1,0:T(1,128)}', space=vmem, size = 0x12000, scoped, tag = 'internal scratch']
  %s0 = inlined_call_operand.vmem [shape: f32[2,32], index: 0, kind: input, shape index: {}]
  %s1 = inlined_call_operand.vmem [shape: f32[32,128], index: 1, kind: input, shape index: {}]
  %s2 = inlined_call_operand.vmem [shape: f32[1,128], index: 2, kind: input, shape index: {}]
  %s3 = inlined_call_operand.vmem [shape: f32[2,128], index: 3, kind: output, shape index: {}]
  %s4 = sld [smem:[#allocation0]]
  $region22: #{final_tanh_f.1} parent=0
    _
  %s6 = ssub.s32 1, %s4
  %s7 = scalar_select 0, %s6, %s4
  // Predicated region
  $region2: #{final_tanh_f.1} parent=0 // pred_check
    _
  $region3: #{final_tanh_f.1} parent=0 // pred_check_branch
    %9 = sbr.rel (0) target = $region5
  $region4: #{final_tanh_f.1} parent=0 // pred_region
    _
  $region5: #{final_tanh_f.1} parent=0 // pred_fallthru
    _
  // Predicated region
  $region6: #{final_tanh_f.1} parent=0 // pred_check
    _
  $region7: #{final_tanh_f.1} parent=0 // pred_check_branch
    %11 = sbr.rel (0) target = $region9
  $region8: #{final_tanh_f.1} parent=0 // pred_region
    _
  $region9: #{final_tanh_f.1} parent=0 // pred_fallthru
    _
  // Predicated region
  $region10: #{final_tanh_f.1} parent=0 // pred_check
    _
  $region11: #{final_tanh_f.1} parent=0 // pred_check_branch
    %13 = sbr.rel (0) target = $region13
  $region12: #{final_tanh_f.1} parent=0 // pred_region
    _
  $region13: #{final_tanh_f.1} parent=0 // pred_fallthru
    _
  %v14 = vld [vmem:[%s0] sm:$0x3]
  %v15 = vld [vmem:[%s1] sm:$0xff]
  %v16 = vld [vmem:[%s1 + $0x8] sm:$0xff]
  %v17 = vld [vmem:[%s1 + $0x10] sm:$0xff]
  %v18 = vld [vmem:[%s1 + $0x18] sm:$0xff]
  %v19 = vld [vmem:[%s2] sm:$0x1]
  %v21 = vlaneseq
  %v22 = vshrl.u32 %v21, 7
  %v23 = vsub.s32 0, %v22
  %v24 = vrot.slane %v19, %v23
  %vm26 = vcmask 261120
  %v28 = vsel %vm26, %v14, 0
  %30 = vmatprep.subr.mxu0 0.0
  %31 = vmatpush1.msra.mxu0 %v15
  %32 = vmatprep.subr.mxu0 0.0
  %33 = vmatpush1.msra.mxu0 %v16
  %34 = vmatprep.subr.mxu0 0.0
  %35 = vmatpush1.msra.mxu0 %v17
  %36 = vmatprep.subr.mxu0 0.0
  %37 = vmatpush1.msra.mxu0 %v18
  %38 = vmatprep.subr.mxu0 0.0
  %39 = vmatpush1.msra.mxu0 0.0
  %40 = vmatprep.subr.mxu0 0.0
  %41 = vmatpush1.msra.mxu0 0.0
  %42 = vmatprep.subr.mxu0 0.0
  %43 = vmatpush1.msra.mxu0 0.0
  %44 = vmatprep.subr.mxu0 0.0
  %45 = vmatpush1.msra.mxu0 0.0
  %46 = vmatprep.subr.mxu0 0.0
  %47 = vmatpush1.msra.mxu0 0.0
  %48 = vmatprep.subr.mxu0 0.0
  %49 = vmatpush1.msra.mxu0 0.0
  %50 = vmatprep.subr.mxu0 0.0
  %51 = vmatpush1.msra.mxu0 0.0
  %52 = vmatprep.subr.mxu0 0.0
  %53 = vmatpush1.msra.mxu0 0.0
  %54 = vmatprep.subr.mxu0 0.0
  %55 = vmatpush1.msra.mxu0 0.0
  %56 = vmatprep.subr.mxu0 0.0
  %57 = vmatpush1.msra.mxu0 0.0
  %58 = vmatprep.subr.mxu0 0.0
  %59 = vmatpush1.msra.mxu0 0.0
  %60 = vmatprep.subr.mxu0 0.0
  %61 = vmatpush1.msra.mxu0 0.0
  %62 = vmatprep.subr.mxu0 0.0
  %63 = vmatpush1.msra.mxu0 0.0
  %64 = vmatprep.subr.mxu0 0.0
  %65 = vmatpush1.msra.mxu0 0.0
  %66 = vmatprep.subr.mxu0 0.0
  %67 = vmatpush1.msra.mxu0 0.0
  %68 = vmatprep.subr.mxu0 0.0
  %69 = vmatpush1.msra.mxu0 0.0
  %70 = vmatprep.subr.mxu0 0.0
  %71 = vmatpush1.msra.mxu0 0.0
  %72 = vmatprep.subr.mxu0 0.0
  %73 = vmatpush1.msra.mxu0 0.0
  %74 = vmatprep.subr.mxu0 0.0
  %75 = vmatpush1.msra.mxu0 0.0
  %76 = vmatprep.subr.mxu0 0.0
  %77 = vmatpush1.msra.mxu0 0.0
  %78 = vmatprep.subr.mxu0 0.0
  %79 = vmatpush1.msra.mxu0 0.0
  %80 = vmatprep.subr.mxu0 0.0
  %81 = vmatpush1.msra.mxu0 0.0
  %82 = vmatprep.subr.mxu0 0.0
  %83 = vmatpush1.msra.mxu0 0.0
  %84 = vmatprep.subr.mxu0 0.0
  %85 = vmatpush1.msra.mxu0 0.0
  %86 = vmatprep.subr.mxu0 0.0
  %87 = vmatpush1.msra.mxu0 0.0
  %88 = vmatprep.subr.mxu0 0.0
  %89 = vmatpush1.msra.mxu0 0.0
  %90 = vmatprep.subr.mxu0 0.0
  %91 = vmatpush1.msra.mxu0 0.0
  %92 = vmatprep.subr.mxu0 0.0
  %93 = vmatpush1.msra.mxu0 0.0
  %94 = vmatprep.mubr.f32.mxu0 0.0
  %95 = vmatmul.mubr.f32.gmra.mrb[0].mxu0 %v28
  %v96 = vpop.f32.mrb[0].mxu0
  %v97 = vadd.f32 %v24, %v96
  %v98 = vpop.f32.mrb[0].mxu0
  %99 = vdwg.mxu0
  %v100 = vmax.f32 %v97, 0.0
  %v101 = vtanh.pop %v100
  %102 = vst [vmem:[%s3] sm:$0x3] %v101
  // Predicated region
  $region14: #{final_tanh_f.1} parent=0 // pred_check
    _
  $region15: #{final_tanh_f.1} parent=0 // pred_check_branch
    %104 = sbr.rel (0) target = $region17
  $region16: #{final_tanh_f.1} parent=0 // pred_region
    _
  $region17: #{final_tanh_f.1} parent=0 // pred_fallthru
    _
  // Predicated region
  $region18: #{final_tanh_f.1} parent=0 // pred_check
    _
  $region19: #{final_tanh_f.1} parent=0 // pred_check_branch
    %106 = sbr.rel (0) target = $region21
  $region20: #{final_tanh_f.1} parent=0 // pred_region
    _
  $region21: #{final_tanh_f.1} parent=0 // pred_fallthru
    _

</llo_original>
